<compile_context>
chip_gen: v7x
topology: tpu7x:2x2x1
jax: 0.10.0
libtpu: 0.0.40
codegen_flags: <defaults>
</compile_context>

<pallas_src>
import functools

import jax
import jax.numpy as jnp
from jax.experimental import pallas as pl
from jax.experimental.pallas import tpu as pltpu

LN_EPS = 1e-5  # PyTorch nn.LayerNorm default


def _round_up(n, m):
    return ((n + m - 1) // m) * m


def _ffn_kernel(x_ref, gamma_ref, beta_ref, w1_ref, b1_ref, w2_ref, b2_ref, o_ref,
                *, d_in, compute_dtype):
    # x_ref: (tile_rows, d_in_pad) tile of the flattened, feature-padded input.
    x = x_ref[...].astype(jnp.float32)
    d_in_pad = x.shape[-1]

    # --- LayerNorm over the real feature lanes (padding lanes are zero) -------
    inv_d = jnp.float32(1.0 / d_in)
    mean = jnp.sum(x, axis=-1, keepdims=True) * inv_d  # zeros in pad lanes don't bias the sum
    centered = x - mean
    if d_in != d_in_pad:
        lane = jax.lax.broadcasted_iota(jnp.int32, (1, d_in_pad), 1)
        centered = jnp.where(lane < d_in, centered, 0.0)
    var = jnp.sum(centered * centered, axis=-1, keepdims=True) * inv_d  # biased variance
    xn = centered * jax.lax.rsqrt(var + LN_EPS)
    # gamma/beta are zero-padded, so padded lanes of xn stay exactly 0.
    xn = xn * gamma_ref[...] + beta_ref[...]

    # --- Conv1d(k=1) #1 : bf16 operands, f32 accumulation on the MXU -----------
    h = jnp.dot(xn.astype(compute_dtype), w1_ref[...],
                preferred_element_type=jnp.float32) + b1_ref[...]

    # --- GeLU (tanh approximation) in f32; tanh rides the otherwise idle EUP ---
    h = 0.5 * h * (1.0 + jnp.tanh(0.7978845608028654 * (h + 0.044715 * h * h * h)))

    # --- Conv1d(k=1) #2 ---------------------------------------------------------
    y = jnp.dot(h.astype(compute_dtype), w2_ref[...],
                preferred_element_type=jnp.float32) + b2_ref[...]

    # --- residual add (dropout is identity at inference) -----------------------
    o_ref[...] = (x + y).astype(o_ref.dtype)


@functools.partial(jax.jit, static_argnames=("tile_rows", "compute_dtype"))
def positionwise_ffn(x, gamma, beta, w1, b1, w2, b2, *,
                     tile_rows=256, compute_dtype=jnp.bfloat16):
    """x: [bz, len_q, d_in] -> [bz, len_q, d_in]."""
    bz, len_q, d_in = x.shape
    d_in_w, d_ff = w1.shape
    assert d_in_w == d_in

    rows = bz * len_q
    d_in_p = _round_up(d_in, 128)   # lane-dense feature axes
    d_ff_p = _round_up(d_ff, 128)

    # Clamp the row tile for tiny inputs, then pad rows so the grid divides evenly.
    tile_rows = min(tile_rows, _round_up(rows, 8))
    rows_p = _round_up(rows, tile_rows)

    f32 = jnp.float32
    x2d = jnp.pad(x.reshape(rows, d_in), ((0, rows_p - rows), (0, d_in_p - d_in)))
    gamma2d = jnp.pad(gamma.astype(f32).reshape(1, d_in), ((0, 0), (0, d_in_p - d_in)))
    beta2d = jnp.pad(beta.astype(f32).reshape(1, d_in), ((0, 0), (0, d_in_p - d_in)))
    b1_2d = jnp.pad(b1.astype(f32).reshape(1, d_ff), ((0, 0), (0, d_ff_p - d_ff)))
    b2_2d = jnp.pad(b2.astype(f32).reshape(1, d_in), ((0, 0), (0, d_in_p - d_in)))
    # Weights stored in the matmul compute dtype (bf16 by default): MXU-friendly and
    # half the resident VMEM / DMA traffic.
    w1_p = jnp.pad(w1, ((0, d_in_p - d_in), (0, d_ff_p - d_ff))).astype(compute_dtype)
    w2_p = jnp.pad(w2, ((0, d_ff_p - d_ff), (0, d_in_p - d_in))).astype(compute_dtype)

    grid = (rows_p // tile_rows,)

    # --- explicit VMEM budget (weights + double-buffered tiles + f32 intermediates)
    w_itemsize = jnp.dtype(compute_dtype).itemsize
    in_itemsize = x.dtype.itemsize
    weight_bytes = 2 * (d_in_p * d_ff_p + d_ff_p * d_in_p) * w_itemsize      # 2 bufs each
    tile_bytes = 2 * 2 * tile_rows * d_in_p * in_itemsize                    # x + out, 2 bufs
    interm_bytes = tile_rows * (2 * d_in_p + d_ff_p) * 4                     # x/xn/h in f32
    small_bytes = 2 * (3 * d_in_p + d_ff_p) * 4
    vmem_needed = weight_bytes + tile_bytes + interm_bytes + small_bytes
    vmem_limit = int(min(max(1.25 * vmem_needed + (2 << 20), 24 << 20), 96 << 20))

    cost = pl.CostEstimate(
        flops=2 * 2 * rows_p * d_in_p * d_ff_p,          # two matmuls
        transcendentals=rows_p * d_ff_p,                 # tanh in GeLU
        bytes_accessed=(2 * rows_p * d_in_p * in_itemsize
                        + (d_in_p * d_ff_p + d_ff_p * d_in_p) * w_itemsize),
    )

    kernel = functools.partial(_ffn_kernel, d_in=d_in, compute_dtype=compute_dtype)

    out2d = pl.pallas_call(
        kernel,
        out_shape=jax.ShapeDtypeStruct((rows_p, d_in_p), x.dtype),
        grid_spec=pltpu.PrefetchScalarGridSpec(
            num_scalar_prefetch=0,
            grid=grid,
            in_specs=[
                pl.BlockSpec((tile_rows, d_in_p), lambda i: (i, 0)),   # x tile
                pl.BlockSpec((1, d_in_p), lambda i: (0, 0)),           # gamma
                pl.BlockSpec((1, d_in_p), lambda i: (0, 0)),           # beta
                pl.BlockSpec((d_in_p, d_ff_p), lambda i: (0, 0)),      # W1 (bf16)
                pl.BlockSpec((1, d_ff_p), lambda i: (0, 0)),           # b1
                pl.BlockSpec((d_ff_p, d_in_p), lambda i: (0, 0)),      # W2 (bf16)
                pl.BlockSpec((1, d_in_p), lambda i: (0, 0)),           # b2
            ],
            out_specs=pl.BlockSpec((tile_rows, d_in_p), lambda i: (i, 0)),
        ),
        compiler_params=pltpu.CompilerParams(
            dimension_semantics=("parallel",),
            vmem_limit_bytes=vmem_limit,
        ),
        cost_estimate=cost,
    )(x2d, gamma2d, beta2d, w1_p, b1_2d, w2_p, b2_2d)

    return out2d[:rows, :d_in].reshape(bz, len_q, d_in)


if __name__ == "__main__":
    # Small shapes consistent with the module's forward: [bz, len_q, d_model]
    bz, len_q, d_in, d_ff = 2, 8, 32, 64

    key = jax.random.PRNGKey(0)
    kx, kw1, kb1, kw2, kb2 = jax.random.split(key, 5)

    x = jax.random.normal(kx, (bz, len_q, d_in), dtype=jnp.float32)

    # LayerNorm params (PyTorch default init: ones / zeros)
    gamma = jnp.ones((d_in,), dtype=jnp.float32)
    beta = jnp.zeros((d_in,), dtype=jnp.float32)

    # Conv1d(k=1) weights.  PyTorch weight shape is [out_ch, in_ch, 1]; we store the
    # transposed matmul form W[in_ch, out_ch] so the kernel computes x @ W + b.
    w1 = 0.1 * jax.random.normal(kw1, (d_in, d_ff), dtype=jnp.float32)
    b1 = 0.1 * jax.random.normal(kb1, (d_ff,), dtype=jnp.float32)
    w2 = 0.1 * jax.random.normal(kw2, (d_ff, d_in), dtype=jnp.float32)
    b2 = 0.1 * jax.random.normal(kb2, (d_in,), dtype=jnp.float32)

    # pure-JAX reference (f32)
    def ref(x):
        mean = jnp.mean(x, axis=-1, keepdims=True)
        var = jnp.mean((x - mean) ** 2, axis=-1, keepdims=True)
        xn = (x - mean) / jnp.sqrt(var + LN_EPS) * gamma + beta
        h = xn @ w1 + b1
        h = 0.5 * h * (1.0 + jnp.tanh(0.7978845608028654 * (h + 0.044715 * h ** 3)))
        return x + (h @ w2 + b2)

    want = ref(x)

    # f32 compute path: exact-precision sanity check
    out_f32 = positionwise_ffn(x, gamma, beta, w1, b1, w2, b2,
                               compute_dtype=jnp.float32)
    jax.block_until_ready(out_f32)
    assert out_f32.shape == (bz, len_q, d_in)
    assert jnp.allclose(out_f32, want, atol=1e-4, rtol=1e-4)

    # default (performance) path: bf16 MXU operands, f32 accumulation
    out = positionwise_ffn(x, gamma, beta, w1, b1, w2, b2)
    jax.block_until_ready(out)
    assert out.shape == (bz, len_q, d_in)
    assert jnp.allclose(out, want, atol=3e-2, rtol=3e-2)

    print("KERNEL_OK")
</pallas_src>

<mosaic_0001>
module attributes {stable_mosaic.version = 11 : i64} {
  func.func @_ffn_kernel(%arg0: i32, %arg1: memref<16x128xf32, #tpu.memory_space<vmem>>, %arg2: memref<1x128xf32, #tpu.memory_space<vmem>>, %arg3: memref<1x128xf32, #tpu.memory_space<vmem>>, %arg4: memref<128x128xf32, #tpu.memory_space<vmem>>, %arg5: memref<1x128xf32, #tpu.memory_space<vmem>>, %arg6: memref<128x128xf32, #tpu.memory_space<vmem>>, %arg7: memref<1x128xf32, #tpu.memory_space<vmem>>, %arg8: memref<16x128xf32, #tpu.memory_space<vmem>>) attributes {dimension_semantics = [#tpu.dimension_semantics<parallel>], iteration_bounds = array<i64: 1>, scalar_prefetch = 0 : i64, scratch_operands = 0 : i64, tpu.core_type = #tpu.core_type<tc>, window_params = [{transform_indices = @transform_0, window_bounds = array<i64: 16, 128>}, {pipeline_mode = #tpu.pipeline_mode<synchronous>, transform_indices = @transform_1, window_bounds = array<i64: 1, 128>}, {pipeline_mode = #tpu.pipeline_mode<synchronous>, transform_indices = @transform_2, window_bounds = array<i64: 1, 128>}, {pipeline_mode = #tpu.pipeline_mode<synchronous>, transform_indices = @transform_3, window_bounds = array<i64: 128, 128>}, {pipeline_mode = #tpu.pipeline_mode<synchronous>, transform_indices = @transform_4, window_bounds = array<i64: 1, 128>}, {pipeline_mode = #tpu.pipeline_mode<synchronous>, transform_indices = @transform_5, window_bounds = array<i64: 128, 128>}, {pipeline_mode = #tpu.pipeline_mode<synchronous>, transform_indices = @transform_6, window_bounds = array<i64: 1, 128>}, {transform_indices = @transform_7, window_bounds = array<i64: 16, 128>}]} {
    %c0 = arith.constant 0 : index
    %c0_0 = arith.constant 0 : index
    %0 = vector.load %arg1[%c0, %c0_0] : memref<16x128xf32, #tpu.memory_space<vmem>>, vector<16x128xf32>
    %cst = arith.constant dense<0.000000e+00> : vector<16xf32>
    %1 = vector.multi_reduction <add>, %0, %cst [1] : vector<16x128xf32> to vector<16xf32>
    %2 = vector.shape_cast %1 : vector<16xf32> to vector<16x1xf32>
    %cst_1 = arith.constant 3.125000e-02 : f32
    %3 = vector.broadcast %cst_1 : f32 to vector<16x1xf32>
    %4 = arith.mulf %2, %3 : vector<16x1xf32>
    %5 = vector.broadcast %4 : vector<16x1xf32> to vector<16x128xf32>
    %6 = arith.subf %0, %5 : vector<16x128xf32>
    %7 = tpu.iota {dimensions = array<i32: 1>} : vector<1x128xi32>
    %c32_i32 = arith.constant 32 : i32
    %8 = vector.broadcast %c32_i32 : i32 to vector<1x128xi32>
    %9 = arith.cmpi slt, %7, %8 : vector<1x128xi32>
    %cst_2 = arith.constant 0.000000e+00 : f32
    %10 = vector.shape_cast %9 : vector<1x128xi1> to vector<1x128xi1>
    %11 = vector.broadcast %10 : vector<1x128xi1> to vector<16x128xi1>
    %12 = vector.broadcast %cst_2 : f32 to vector<16x128xf32>
    %13 = arith.select %11, %6, %12 : vector<16x128xi1>, vector<16x128xf32>
    %14 = arith.mulf %13, %13 : vector<16x128xf32>
    %cst_3 = arith.constant dense<0.000000e+00> : vector<16xf32>
    %15 = vector.multi_reduction <add>, %14, %cst_3 [1] : vector<16x128xf32> to vector<16xf32>
    %16 = vector.shape_cast %15 : vector<16xf32> to vector<16x1xf32>
    %cst_4 = arith.constant 3.125000e-02 : f32
    %17 = vector.broadcast %cst_4 : f32 to vector<16x1xf32>
    %18 = arith.mulf %16, %17 : vector<16x1xf32>
    %cst_5 = arith.constant 9.99999974E-6 : f32
    %19 = vector.broadcast %cst_5 : f32 to vector<16x1xf32>
    %20 = arith.addf %18, %19 : vector<16x1xf32>
    %21 = math.rsqrt %20 : vector<16x1xf32>
    %22 = vector.broadcast %21 : vector<16x1xf32> to vector<16x128xf32>
    %23 = arith.mulf %13, %22 : vector<16x128xf32>
    %c0_6 = arith.constant 0 : index
    %c0_7 = arith.constant 0 : index
    %24 = vector.load %arg2[%c0_6, %c0_7] : memref<1x128xf32, #tpu.memory_space<vmem>>, vector<1x128xf32>
    %25 = vector.broadcast %24 : vector<1x128xf32> to vector<16x128xf32>
    %26 = arith.mulf %23, %25 : vector<16x128xf32>
    %c0_8 = arith.constant 0 : index
    %c0_9 = arith.constant 0 : index
    %27 = vector.load %arg3[%c0_8, %c0_9] : memref<1x128xf32, #tpu.memory_space<vmem>>, vector<1x128xf32>
    %28 = vector.broadcast %27 : vector<1x128xf32> to vector<16x128xf32>
    %29 = arith.addf %26, %28 : vector<16x128xf32>
    %c0_10 = arith.constant 0 : index
    %c0_11 = arith.constant 0 : index
    %30 = vector.load %arg4[%c0_10, %c0_11] : memref<128x128xf32, #tpu.memory_space<vmem>>, vector<128x128xf32>
    %cst_12 = arith.constant dense<0.000000e+00> : vector<16x128xf32>
    %31 = tpu.matmul %29, %30, %cst_12 {dimension_numbers = #tpu.dot_dimension_numbers<[1], [0], [0], [1], [0, 0, 1, 1], [], []>} : vector<16x128xf32>, vector<128x128xf32>, vector<16x128xf32> -> vector<16x128xf32>
    %c0_13 = arith.constant 0 : index
    %c0_14 = arith.constant 0 : index
    %32 = vector.load %arg5[%c0_13, %c0_14] : memref<1x128xf32, #tpu.memory_space<vmem>>, vector<1x128xf32>
    %33 = vector.broadcast %32 : vector<1x128xf32> to vector<16x128xf32>
    %34 = arith.addf %31, %33 : vector<16x128xf32>
    %cst_15 = arith.constant 5.000000e-01 : f32
    %35 = vector.broadcast %cst_15 : f32 to vector<16x128xf32>
    %36 = arith.mulf %35, %34 : vector<16x128xf32>
    %cst_16 = arith.constant 4.471500e-02 : f32
    %37 = vector.broadcast %cst_16 : f32 to vector<16x128xf32>
    %38 = arith.mulf %37, %34 : vector<16x128xf32>
    %39 = arith.mulf %38, %34 : vector<16x128xf32>
    %40 = arith.mulf %39, %34 : vector<16x128xf32>
    %41 = arith.addf %34, %40 : vector<16x128xf32>
    %cst_17 = arith.constant 0.797884583 : f32
    %42 = vector.broadcast %cst_17 : f32 to vector<16x128xf32>
    %43 = arith.mulf %42, %41 : vector<16x128xf32>
    %44 = math.tanh %43 : vector<16x128xf32>
    %cst_18 = arith.constant 1.000000e+00 : f32
    %45 = vector.broadcast %cst_18 : f32 to vector<16x128xf32>
    %46 = arith.addf %45, %44 : vector<16x128xf32>
    %47 = arith.mulf %36, %46 : vector<16x128xf32>
    %c0_19 = arith.constant 0 : index
    %c0_20 = arith.constant 0 : index
    %48 = vector.load %arg6[%c0_19, %c0_20] : memref<128x128xf32, #tpu.memory_space<vmem>>, vector<128x128xf32>
    %cst_21 = arith.constant dense<0.000000e+00> : vector<16x128xf32>
    %49 = tpu.matmul %47, %48, %cst_21 {dimension_numbers = #tpu.dot_dimension_numbers<[1], [0], [0], [1], [0, 0, 1, 1], [], []>} : vector<16x128xf32>, vector<128x128xf32>, vector<16x128xf32> -> vector<16x128xf32>
    %c0_22 = arith.constant 0 : index
    %c0_23 = arith.constant 0 : index
    %50 = vector.load %arg7[%c0_22, %c0_23] : memref<1x128xf32, #tpu.memory_space<vmem>>, vector<1x128xf32>
    %51 = vector.broadcast %50 : vector<1x128xf32> to vector<16x128xf32>
    %52 = arith.addf %49, %51 : vector<16x128xf32>
    %53 = arith.addf %0, %52 : vector<16x128xf32>
    %c0_24 = arith.constant 0 : index
    %c0_25 = arith.constant 0 : index
    %54 = vector.load %arg8[%c0_24, %c0_25] : memref<16x128xf32, #tpu.memory_space<vmem>>, vector<16x128xf32>
    tpu.vector_store %arg8[%c0_24, %c0_25], %53 {strides = array<i32>} : memref<16x128xf32, #tpu.memory_space<vmem>>, vector<16x128xf32>,
    return
  }
  func.func @transform_0(%arg0: i32) -> (i32, i32) {
    %c0_i32 = arith.constant 0 : i32
    %c0_i32_0 = arith.constant 0 : i32
    return %arg0, %c0_i32 : i32, i32
  }
  func.func @transform_1(%arg0: i32) -> (i32, i32) {
    %c0_i32 = arith.constant 0 : i32
    %c0_i32_0 = arith.constant 0 : i32
    %c0_i32_1 = arith.constant 0 : i32
    return %c0_i32, %c0_i32_0 : i32, i32
  }
  func.func @transform_2(%arg0: i32) -> (i32, i32) {
    %c0_i32 = arith.constant 0 : i32
    %c0_i32_0 = arith.constant 0 : i32
    %c0_i32_1 = arith.constant 0 : i32
    return %c0_i32, %c0_i32_0 : i32, i32
  }
  func.func @transform_3(%arg0: i32) -> (i32, i32) {
    %c0_i32 = arith.constant 0 : i32
    %c0_i32_0 = arith.constant 0 : i32
    %c0_i32_1 = arith.constant 0 : i32
    return %c0_i32, %c0_i32_0 : i32, i32
  }
  func.func @transform_4(%arg0: i32) -> (i32, i32) {
    %c0_i32 = arith.constant 0 : i32
    %c0_i32_0 = arith.constant 0 : i32
    %c0_i32_1 = arith.constant 0 : i32
    return %c0_i32, %c0_i32_0 : i32, i32
  }
  func.func @transform_5(%arg0: i32) -> (i32, i32) {
    %c0_i32 = arith.constant 0 : i32
    %c0_i32_0 = arith.constant 0 : i32
    %c0_i32_1 = arith.constant 0 : i32
    return %c0_i32, %c0_i32_0 : i32, i32
  }
  func.func @transform_6(%arg0: i32) -> (i32, i32) {
    %c0_i32 = arith.constant 0 : i32
    %c0_i32_0 = arith.constant 0 : i32
    %c0_i32_1 = arith.constant 0 : i32
    return %c0_i32, %c0_i32_0 : i32, i32
  }
  func.func @transform_7(%arg0: i32) -> (i32, i32) {
    %c0_i32 = arith.constant 0 : i32
    %c0_i32_0 = arith.constant 0 : i32
    return %arg0, %c0_i32 : i32, i32
  }
}

</mosaic_0001>

<llo_original>
// kernel: positionwise_ffn.1
$region0: #{positionwise_ffn.1}
  #allocation0 [shape = 'u32[]', space=smem, size = 0x4, offset = 0x4, fixed_abs, tag = 'smem constant byte address 0x4 - core index']
  #allocation1 [shape = 'u32[144,128]{1,0:T(1,128)}', space=vmem, size = 0x12000, scoped, tag = 'internal scratch']
  %s0 = inlined_call_operand.vmem [shape: f32[16,128], index: 0, kind: input, shape index: {}]
  %s1 = inlined_call_operand.vmem [shape: f32[1,128], index: 1, kind: input, shape index: {}]
  %s2 = inlined_call_operand.vmem [shape: f32[1,128], index: 2, kind: input, shape index: {}]
  %s3 = inlined_call_operand.vmem [shape: f32[128,128], index: 3, kind: input, shape index: {}]
  %s4 = inlined_call_operand.vmem [shape: f32[1,128], index: 4, kind: input, shape index: {}]
  %s5 = inlined_call_operand.vmem [shape: f32[128,128], index: 5, kind: input, shape index: {}]
  %s6 = inlined_call_operand.vmem [shape: f32[1,128], index: 6, kind: input, shape index: {}]
  %s7 = inlined_call_operand.vmem [shape: f32[16,128], index: 7, kind: output, shape index: {}]
  %s8 = sld [smem:[#allocation0]]
  $region38: #{positionwise_ffn.1} parent=0
    _
  %s10 = ssub.s32 1, %s8
  %s11 = scalar_select 0, %s10, %s8
  // Predicated region
  $region2: #{positionwise_ffn.1} parent=0 // pred_check
    _
  $region3: #{positionwise_ffn.1} parent=0 // pred_check_branch
    %13 = sbr.rel (0) target = $region5
  $region4: #{positionwise_ffn.1} parent=0 // pred_region
    _
  $region5: #{positionwise_ffn.1} parent=0 // pred_fallthru
    _
  // Predicated region
  $region6: #{positionwise_ffn.1} parent=0 // pred_check
    _
  $region7: #{positionwise_ffn.1} parent=0 // pred_check_branch
    %15 = sbr.rel (0) target = $region9
  $region8: #{positionwise_ffn.1} parent=0 // pred_region
    _
  $region9: #{positionwise_ffn.1} parent=0 // pred_fallthru
    _
  // Predicated region
  $region10: #{positionwise_ffn.1} parent=0 // pred_check
    _
  $region11: #{positionwise_ffn.1} parent=0 // pred_check_branch
    %17 = sbr.rel (0) target = $region13
  $region12: #{positionwise_ffn.1} parent=0 // pred_region
    _
  $region13: #{positionwise_ffn.1} parent=0 // pred_fallthru
    _
  // Predicated region
  $region14: #{positionwise_ffn.1} parent=0 // pred_check
    _
  $region15: #{positionwise_ffn.1} parent=0 // pred_check_branch
    %19 = sbr.rel (0) target = $region17
  $region16: #{positionwise_ffn.1} parent=0 // pred_region
    _
  $region17: #{positionwise_ffn.1} parent=0 // pred_fallthru
    _
  // Predicated region
  $region18: #{positionwise_ffn.1} parent=0 // pred_check
    _
  $region19: #{positionwise_ffn.1} parent=0 // pred_check_branch
    %21 = sbr.rel (0) target = $region21
  $region20: #{positionwise_ffn.1} parent=0 // pred_region
    _
  $region21: #{positionwise_ffn.1} parent=0 // pred_fallthru
    _
  // Predicated region
  $region22: #{positionwise_ffn.1} parent=0 // pred_check
    _
  $region23: #{positionwise_ffn.1} parent=0 // pred_check_branch
    %23 = sbr.rel (0) target = $region25
  $region24: #{positionwise_ffn.1} parent=0 // pred_region
    _
  $region25: #{positionwise_ffn.1} parent=0 // pred_fallthru
    _
  // Predicated region
  $region26: #{positionwise_ffn.1} parent=0 // pred_check
    _
  $region27: #{positionwise_ffn.1} parent=0 // pred_check_branch
    %25 = sbr.rel (0) target = $region29
  $region28: #{positionwise_ffn.1} parent=0 // pred_region
    _
  $region29: #{positionwise_ffn.1} parent=0 // pred_fallthru
    _
  %v26 = vld [vmem:[%s0] sm:$0xff]
  %v27 = vld [vmem:[%s0 + $0x8] sm:$0xff]
  %28 = vadd.xlane.f32.xlu0 %v26
  %v29 = vpop.xlane.xlu0 %28
  %30 = vadd.xlane.f32.xlu0 %v27
  %v31 = vpop.xlane.xlu0 %30
  %v32 = vmul.f32 %v29, 0.03125
  %v33 = vmul.f32 %v31, 0.03125
  %v34 = vsub.f32 %v26, %v32
  %v35 = vsub.f32 %v27, %v33
  %v36 = vlaneseq
  %v37 = vand.u32 %v36, 127
  %vm38 = vcmp.lt.s32.totalorder %v37, 32
  %v39 = vsel %vm38, 1, 0
  %vm40 = vcmp.eq.s32.totalorder %v39, 1
  %v41 = vsel %vm40, %v34, 0.0
  %v42 = vsel %vm40, %v35, 0.0
  %v43 = vmul.f32 %v41, %v41
  %v44 = vmul.f32 %v42, %v42
  %45 = vadd.xlane.f32.xlu0 %v43
  %v46 = vpop.xlane.xlu0 %45
  %47 = vadd.xlane.f32.xlu0 %v44
  %v48 = vpop.xlane.xlu0 %47
  %v49 = vmul.f32 %v46, 0.03125
  %v50 = vmul.f32 %v48, 0.03125
  %v51 = vadd.f32 %v49, 1e-05
  %v52 = vadd.f32 %v50, 1e-05
  %v53 = vrsqrt.pop %v51
  %v54 = vrsqrt.pop %v52
  %v55 = vmul.f32 %v41, %v53
  %v56 = vmul.f32 %v42, %v54
  %v57 = vld [vmem:[%s1] sm:$0x1]
  %v59 = vlaneseq
  %v60 = vshrl.u32 %v59, 7
  %v61 = vsub.s32 0, %v60
  %v62 = vrot.slane %v57, %v61
  %v64 = vmul.f32 %v55, %v62
  %v65 = vmul.f32 %v56, %v62
  %v66 = vld [vmem:[%s2] sm:$0x1]
  %v68 = vlaneseq
  %v69 = vshrl.u32 %v68, 7
  %v70 = vsub.s32 0, %v69
  %v71 = vrot.slane %v66, %v70
  %v73 = vadd.f32 %v64, %v71
  %v74 = vadd.f32 %v65, %v71
  %v75 = vld [vmem:[%s3] sm:$0xff]
  %v76 = vld [vmem:[%s3 + $0x8] sm:$0xff]
  %v77 = vld [vmem:[%s3 + $0x10] sm:$0xff]
  %v78 = vld [vmem:[%s3 + $0x18] sm:$0xff]
  %v79 = vld [vmem:[%s3 + $0x20] sm:$0xff]
  %v80 = vld [vmem:[%s3 + $0x28] sm:$0xff]
  %v81 = vld [vmem:[%s3 + $0x30] sm:$0xff]
  %v82 = vld [vmem:[%s3 + $0x38] sm:$0xff]
  %v83 = vld [vmem:[%s3 + $0x40] sm:$0xff]
  %v84 = vld [vmem:[%s3 + $0x48] sm:$0xff]
  %v85 = vld [vmem:[%s3 + $0x50] sm:$0xff]
  %v86 = vld [vmem:[%s3 + $0x58] sm:$0xff]
  %v87 = vld [vmem:[%s3 + $0x60] sm:$0xff]
  %v88 = vld [vmem:[%s3 + $0x68] sm:$0xff]
  %v89 = vld [vmem:[%s3 + $0x70] sm:$0xff]
  %v90 = vld [vmem:[%s3 + $0x78] sm:$0xff]
  %v91 = vld [vmem:[%s4] sm:$0x1]
  %v93 = vlaneseq
  %v94 = vshrl.u32 %v93, 7
  %v95 = vsub.s32 0, %v94
  %v96 = vrot.slane %v91, %v95
  %98 = vmatprep.subr.mxu0 0.0
  %99 = vmatpush1.msra.mxu0 %v75
  %100 = vmatprep.subr.mxu0 0.0
  %101 = vmatpush1.msra.mxu0 %v76
  %102 = vmatprep.subr.mxu0 0.0
  %103 = vmatpush1.msra.mxu0 %v77
  %104 = vmatprep.subr.mxu0 0.0
  %105 = vmatpush1.msra.mxu0 %v78
  %106 = vmatprep.subr.mxu0 0.0
  %107 = vmatpush1.msra.mxu0 %v79
  %108 = vmatprep.subr.mxu0 0.0
  %109 = vmatpush1.msra.mxu0 %v80
  %110 = vmatprep.subr.mxu0 0.0
  %111 = vmatpush1.msra.mxu0 %v81
  %112 = vmatprep.subr.mxu0 0.0
  %113 = vmatpush1.msra.mxu0 %v82
  %114 = vmatprep.subr.mxu0 0.0
  %115 = vmatpush1.msra.mxu0 %v83
  %116 = vmatprep.subr.mxu0 0.0
  %117 = vmatpush1.msra.mxu0 %v84
  %118 = vmatprep.subr.mxu0 0.0
  %119 = vmatpush1.msra.mxu0 %v85
  %120 = vmatprep.subr.mxu0 0.0
  %121 = vmatpush1.msra.mxu0 %v86
  %122 = vmatprep.subr.mxu0 0.0
  %123 = vmatpush1.msra.mxu0 %v87
  %124 = vmatprep.subr.mxu0 0.0
  %125 = vmatpush1.msra.mxu0 %v88
  %126 = vmatprep.subr.mxu0 0.0
  %127 = vmatpush1.msra.mxu0 %v89
  %128 = vmatprep.subr.mxu0 0.0
  %129 = vmatpush1.msra.mxu0 %v90
  %130 = vmatprep.subr.mxu0 0.0
  %131 = vmatpush1.msra.mxu0 0.0
  %132 = vmatprep.subr.mxu0 0.0
  %133 = vmatpush1.msra.mxu0 0.0
  %134 = vmatprep.subr.mxu0 0.0
  %135 = vmatpush1.msra.mxu0 0.0
  %136 = vmatprep.subr.mxu0 0.0
  %137 = vmatpush1.msra.mxu0 0.0
  %138 = vmatprep.subr.mxu0 0.0
  %139 = vmatpush1.msra.mxu0 0.0
  %140 = vmatprep.subr.mxu0 0.0
  %141 = vmatpush1.msra.mxu0 0.0
  %142 = vmatprep.subr.mxu0 0.0
  %143 = vmatpush1.msra.mxu0 0.0
  %144 = vmatprep.subr.mxu0 0.0
  %145 = vmatpush1.msra.mxu0 0.0
  %146 = vmatprep.subr.mxu0 0.0
  %147 = vmatpush1.msra.mxu0 0.0
  %148 = vmatprep.subr.mxu0 0.0
  %149 = vmatpush1.msra.mxu0 0.0
  %150 = vmatprep.subr.mxu0 0.0
  %151 = vmatpush1.msra.mxu0 0.0
  %152 = vmatprep.subr.mxu0 0.0
  %153 = vmatpush1.msra.mxu0 0.0
  %154 = vmatprep.subr.mxu0 0.0
  %155 = vmatpush1.msra.mxu0 0.0
  %156 = vmatprep.subr.mxu0 0.0
  %157 = vmatpush1.msra.mxu0 0.0
  %158 = vmatprep.subr.mxu0 0.0
  %159 = vmatpush1.msra.mxu0 0.0
  %160 = vmatprep.subr.mxu0 0.0
  %161 = vmatpush1.msra.mxu0 0.0
  %162 = vmatprep.mubr.f32.mxu0 0.0
  %163 = vmatmul.mubr.f32.gmra.mrb[0].mxu0 %v73
  %v164 = vpop.f32.mrb[0].mxu0
  %v165 = vadd.f32 %v96, %v164
  %v166 = vpop.f32.mrb[0].mxu0
  %167 = vmatprep.mubr.f32.mxu0 0.0
  %168 = vmatmul.mubr.f32.gmra.mrb[0].mxu0 %v74
  %v169 = vpop.f32.mrb[0].mxu0
  %v170 = vadd.f32 %v96, %v169
  %v171 = vpop.f32.mrb[0].mxu0
  %172 = vdwg.mxu0
  %v173 = vmul.f32 %v165, 0.5
  %v174 = vmul.f32 %v170, 0.5
  %v175 = vmul.f32 %v165, 0.044715
  %v176 = vmul.f32 %v170, 0.044715
  %v177 = vmul.f32 %v175, %v165
  %v178 = vmul.f32 %v176, %v170
  %v179 = vmul.f32 %v177, %v165
  %v180 = vmul.f32 %v178, %v170
  %v181 = vadd.f32 %v165, %v179
  %v182 = vadd.f32 %v170, %v180
  %v183 = vmul.f32 %v181, 0.7978846
  %v184 = vmul.f32 %v182, 0.7978846
  %v185 = vtanh.pop %v183
  %v186 = vtanh.pop %v184
  %v187 = vadd.f32 %v185, 1.0
  %v188 = vadd.f32 %v186, 1.0
  %v189 = vmul.f32 %v173, %v187
  %v190 = vmul.f32 %v174, %v188
  %v191 = vld [vmem:[%s5] sm:$0xff]
  %v192 = vld [vmem:[%s5 + $0x8] sm:$0xff]
  %v193 = vld [vmem:[%s5 + $0x10] sm:$0xff]
  %v194 = vld [vmem:[%s5 + $0x18] sm:$0xff]
  %v195 = vld [vmem:[%s5 + $0x20] sm:$0xff]
  %v196 = vld [vmem:[%s5 + $0x28] sm:$0xff]
  %v197 = vld [vmem:[%s5 + $0x30] sm:$0xff]
  %v198 = vld [vmem:[%s5 + $0x38] sm:$0xff]
  %v199 = vld [vmem:[%s5 + $0x40] sm:$0xff]
  %v200 = vld [vmem:[%s5 + $0x48] sm:$0xff]
  %v201 = vld [vmem:[%s5 + $0x50] sm:$0xff]
  %v202 = vld [vmem:[%s5 + $0x58] sm:$0xff]
  %v203 = vld [vmem:[%s5 + $0x60] sm:$0xff]
  %v204 = vld [vmem:[%s5 + $0x68] sm:$0xff]
  %v205 = vld [vmem:[%s5 + $0x70] sm:$0xff]
  %v206 = vld [vmem:[%s5 + $0x78] sm:$0xff]
  %v207 = vld [vmem:[%s6] sm:$0x1]
  %v209 = vlaneseq
  %v210 = vshrl.u32 %v209, 7
  %v211 = vsub.s32 0, %v210
  %v212 = vrot.slane %v207, %v211
  %214 = vmatprep.subr.mxu0 0.0
  %215 = vmatpush1.msra.mxu0 %v191
  %216 = vmatprep.subr.mxu0 0.0
  %217 = vmatpush1.msra.mxu0 %v192
  %218 = vmatprep.subr.mxu0 0.0
  %219 = vmatpush1.msra.mxu0 %v193
  %220 = vmatprep.subr.mxu0 0.0
  %221 = vmatpush1.msra.mxu0 %v194
  %222 = vmatprep.subr.mxu0 0.0
  %223 = vmatpush1.msra.mxu0 %v195
  %224 = vmatprep.subr.mxu0 0.0
  %225 = vmatpush1.msra.mxu0 %v196
  %226 = vmatprep.subr.mxu0 0.0
  %227 = vmatpush1.msra.mxu0 %v197
  %228 = vmatprep.subr.mxu0 0.0
  %229 = vmatpush1.msra.mxu0 %v198
  %230 = vmatprep.subr.mxu0 0.0
  %231 = vmatpush1.msra.mxu0 %v199
  %232 = vmatprep.subr.mxu0 0.0
  %233 = vmatpush1.msra.mxu0 %v200
  %234 = vmatprep.subr.mxu0 0.0
  %235 = vmatpush1.msra.mxu0 %v201
  %236 = vmatprep.subr.mxu0 0.0
  %237 = vmatpush1.msra.mxu0 %v202
  %238 = vmatprep.subr.mxu0 0.0
  %239 = vmatpush1.msra.mxu0 %v203
  %240 = vmatprep.subr.mxu0 0.0
  %241 = vmatpush1.msra.mxu0 %v204
  %242 = vmatprep.subr.mxu0 0.0
  %243 = vmatpush1.msra.mxu0 %v205
  %244 = vmatprep.subr.mxu0 0.0
  %245 = vmatpush1.msra.mxu0 %v206
  %246 = vmatprep.subr.mxu0 0.0
  %247 = vmatpush1.msra.mxu0 0.0
  %248 = vmatprep.subr.mxu0 0.0
  %249 = vmatpush1.msra.mxu0 0.0
  %250 = vmatprep.subr.mxu0 0.0
  %251 = vmatpush1.msra.mxu0 0.0
  %252 = vmatprep.subr.mxu0 0.0
  %253 = vmatpush1.msra.mxu0 0.0
  %254 = vmatprep.subr.mxu0 0.0
  %255 = vmatpush1.msra.mxu0 0.0
  %256 = vmatprep.subr.mxu0 0.0
  %257 = vmatpush1.msra.mxu0 0.0
  %258 = vmatprep.subr.mxu0 0.0
  %259 = vmatpush1.msra.mxu0 0.0
  %260 = vmatprep.subr.mxu0 0.0
  %261 = vmatpush1.msra.mxu0 0.0
  %262 = vmatprep.subr.mxu0 0.0
  %263 = vmatpush1.msra.mxu0 0.0
  %264 = vmatprep.subr.mxu0 0.0
  %265 = vmatpush1.msra.mxu0 0.0
  %266 = vmatprep.subr.mxu0 0.0
  %267 = vmatpush1.msra.mxu0 0.0
  %268 = vmatprep.subr.mxu0 0.0
  %269 = vmatpush1.msra.mxu0 0.0
  %270 = vmatprep.subr.mxu0 0.0
  %271 = vmatpush1.msra.mxu0 0.0
  %272 = vmatprep.subr.mxu0 0.0
  %273 = vmatpush1.msra.mxu0 0.0
  %274 = vmatprep.subr.mxu0 0.0
  %275 = vmatpush1.msra.mxu0 0.0
  %276 = vmatprep.subr.mxu0 0.0
  %277 = vmatpush1.msra.mxu0 0.0
  %278 = vmatprep.mubr.f32.mxu0 0.0
  %279 = vmatmul.mubr.f32.gmra.mrb[0].mxu0 %v189
  %v280 = vpop.f32.mrb[0].mxu0
  %v281 = vadd.f32 %v212, %v280
  %v282 = vpop.f32.mrb[0].mxu0
  %283 = vmatprep.mubr.f32.mxu0 0.0
  %284 = vmatmul.mubr.f32.gmra.mrb[0].mxu0 %v190
  %v285 = vpop.f32.mrb[0].mxu0
  %v286 = vadd.f32 %v212, %v285
  %v287 = vpop.f32.mrb[0].mxu0
  %288 = vdwg.mxu0
  %v289 = vadd.f32 %v26, %v281
  %v290 = vadd.f32 %v27, %v286
  %291 = vst [vmem:[%s7] sm:$0xff] %v289
  %292 = vst [vmem:[%s7 + $0x8] sm:$0xff] %v290
  // Predicated region
  $region30: #{positionwise_ffn.1} parent=0 // pred_check
    _
  $region31: #{positionwise_ffn.1} parent=0 // pred_check_branch
    %294 = sbr.rel (0) target = $region33
  $region32: #{positionwise_ffn.1} parent=0 // pred_region
    _
  $region33: #{positionwise_ffn.1} parent=0 // pred_fallthru
    _
  // Predicated region
  $region34: #{positionwise_ffn.1} parent=0 // pred_check
    _
  $region35: #{positionwise_ffn.1} parent=0 // pred_check_branch
    %296 = sbr.rel (0) target = $region37
  $region36: #{positionwise_ffn.1} parent=0 // pred_region
    _
  $region37: #{positionwise_ffn.1} parent=0 // pred_fallthru
    _

</llo_original>
